<compile_context>
chip_gen: v7x
topology: tpu7x:2x2x1
jax: 0.10.0
libtpu: 0.0.40
codegen_flags: <defaults>
</compile_context>

<pallas_src>
import jax
import jax.numpy as jnp
from jax.experimental import pallas as pl
from jax.experimental.pallas import tpu as pltpu


def _make_kernel(H, W, C, Ci, G):
    WC, WCi, WG = W * C, W * Ci, W * G

    def kernel(x_ref, s1_ref, b1_ref, w1_ref, b2_ref, w2_ref, o_ref):
        x = x_ref[...]                                          # [B, W*C] f32

        # ---- BN1 (folded scale/bias) + ReLU ----
        h = jnp.maximum(x * s1_ref[...] + b1_ref[...], 0.0)

        # ---- conv1 (1x1) as W-block-diagonal matmul, BN2 folded in, ReLU ----
        h = jnp.dot(h, w1_ref[...], preferred_element_type=jnp.float32)
        h = jnp.maximum(h + b2_ref[...], 0.0)                   # [B, W*Ci] f32

        # ---- conv2 (3x3, pad=1) ----
        # dx taps + dx zero-padding are folded into the banded weights; dy
        # taps need two sublane rolls + row-validity masks.  Blocks always
        # hold whole images, so the rolls never cross image boundaries.
        B = h.shape[0]
        hrow = jax.lax.broadcasted_iota(jnp.int32, (B, 1), 0) % H
        h_up = jnp.where(hrow >= 1, pltpu.roll(h, shift=1, axis=0), 0.0)
        h_dn = jnp.where(hrow <= H - 2, pltpu.roll(h, shift=B - 1, axis=0), 0.0)

        # One fused K = 3*W*Ci matmul (accumulates inside the MXU).
        hcat = jnp.concatenate([h_up, h, h_dn], axis=-1)        # [B, 3*W*Ci]
        acc = jnp.dot(hcat, w2_ref[...], preferred_element_type=jnp.float32)

        # TODO(synk): dropout is identity here (inference mode); train-mode
        # dropout would use pltpu.prng_seed / pltpu.stateful_bernoulli.

        # ---- torch.cat([x, out], channel): single full-width lane-dense store.
        o_ref[...] = jnp.concatenate([x, acc], axis=-1).astype(o_ref.dtype)

    return kernel


def _images_per_block(N, H, row_bytes, target_bytes=4 << 20):
    """Whole images per grid step.

    Largest divisor nb of N whose (in+out, double-buffered) block stays within
    ~target_bytes.  Small inputs get a single step (no forced split on
    single-TC v5e/v6e); large inputs naturally get many steps (v7x megacore).
    With >1 grid steps the block row count must be a multiple of 8 ((8,128)).
    """
    if N == 1 or N * H * row_bytes <= target_bytes:
        return N
    for nb in range(N - 1, 0, -1):
        if N % nb == 0 and (nb * H) % 8 == 0 and nb * H * row_bytes <= target_bytes:
            return nb
    return N  # whole array as one block is always layout-legal


def _fold_params(g1, b1, m1, v1, w1, g2, b2, m2, v2, w2, W, eps):
    C, Ci, G = w1.shape[1], w1.shape[0], w2.shape[0]
    WC, WCi, WG = W * C, W * Ci, W * G

    # ---- fold BatchNorm (eval) into scale/bias ----
    scale1 = g1 * jax.lax.rsqrt(v1 + eps)                 # [C]
    bias1 = b1 - m1 * scale1                              # [C]
    scale2 = g2 * jax.lax.rsqrt(v2 + eps)                 # [Ci]
    bias2 = b2 - m2 * scale2                              # [Ci]

    # conv1 weight [Ci, C, 1, 1] -> [C, Ci], with BN2 folded in.
    w1_eff = jnp.transpose(w1[:, :, 0, 0], (1, 0)) * scale2[None, :]

    s1t = jnp.tile(scale1, W).reshape(1, WC)
    b1t = jnp.tile(bias1, W).reshape(1, WC)
    b2t = jnp.tile(bias2, W).reshape(1, WCi)

    # conv1 as a W-block-diagonal matmul in the packed (lane = w*C + c) layout.
    w1big = jnp.einsum('wv,co->wcvo', jnp.eye(W, dtype=w1_eff.dtype), w1_eff)
    w1big = w1big.reshape(WC, WCi)

    # conv2: fold the dx taps (and dx zero padding) into banded weights, one
    # [W*Ci, W*G] band per dy tap, stacked along K for a single fused matmul.
    w2_t = jnp.transpose(w2, (2, 3, 1, 0))                # [ky, kx, Ci, G]
    dvu = jnp.arange(W)[:, None] - jnp.arange(W)[None, :]  # u - v
    band = w2_t[:, jnp.clip(dvu + 1, 0, 2)]               # [3, W, W, Ci, G]
    band = jnp.where((jnp.abs(dvu) <= 1)[None, :, :, None, None], band, 0.0)
    w2cat = jnp.transpose(band, (0, 1, 3, 2, 4)).reshape(3 * WCi, WG)
    return s1t, b1t, w1big, b2t, w2cat


def bottleneck_block(x, g1, b1, m1, v1, w1, g2, b2, m2, v2, w2, eps=1e-5):
    """x: NCHW float32.  Weights in PyTorch layout (OIHW).  Returns NCHW."""
    N, C, H, W = x.shape
    Ci = w1.shape[0]          # inter_size
    G = w2.shape[0]           # growth_rate
    WC, WCi, WG = W * C, W * Ci, W * G

    s1t, b1t, w1big, b2t, w2cat = _fold_params(
        g1, b1, m1, v1, w1, g2, b2, m2, v2, w2, W, eps)

    # TODO(synk): in a dense chain (as in SATRN), keep activations in this
    # packed layout across blocks; the NCHW<->packed transposes below each
    # round-trip the full activation through HBM and belong at chain ends.
    x_packed = jnp.transpose(x, (0, 2, 3, 1)).reshape(N * H, WC)

    row_bytes = (2 * WC + WG) * 4 * 2          # in + out row, double-buffered
    nb = _images_per_block(N, H, row_bytes)
    BR = nb * H
    grid = (N // nb,)

    # VMEM budget: double-buffered in/out blocks + constant operands (also
    # double-buffered by default) + headroom for in-kernel intermediates.
    param_bytes = (2 * WC + WC * WCi + WCi + 3 * WCi * WG) * 4
    need = 2 * (BR * (2 * WC + WG) * 4 + param_bytes) + 8 * BR * WCi * 4
    vmem_limit = int(min(max(4 * need, 32 << 20), 48 << 20))

    kernel = _make_kernel(H, W, C, Ci, G)
    out_packed = pl.pallas_call(
        kernel,
        out_shape=jax.ShapeDtypeStruct((N * H, WC + WG), x.dtype),
        grid=grid,
        in_specs=[
            pl.BlockSpec((BR, WC), lambda i: (i, 0)),          # x (pipelined)
            pl.BlockSpec((1, WC), lambda i: (0, 0)),           # BN1 scale
            pl.BlockSpec((1, WC), lambda i: (0, 0)),           # BN1 bias
            pl.BlockSpec((WC, WCi), lambda i: (0, 0)),         # conv1+BN2 weight
            pl.BlockSpec((1, WCi), lambda i: (0, 0)),          # BN2 bias
            pl.BlockSpec((3 * WCi, WG), lambda i: (0, 0)),     # conv2 banded weight
        ],
        out_specs=pl.BlockSpec((BR, WC + WG), lambda i: (i, 0)),
        compiler_params=pltpu.CompilerParams(
            dimension_semantics=("parallel",),
            vmem_limit_bytes=vmem_limit),
    )(x_packed, s1t, b1t, w1big, b2t, w2cat)

    # unscramble the lane-packed output back to NCHW (+ channel concat order)
    xs = out_packed[:, :WC].reshape(N, H, W, C)
    ns = out_packed[:, WC:].reshape(N, H, W, G)
    out = jnp.concatenate([xs, ns], axis=-1)                # NHWC
    return jnp.transpose(out, (0, 3, 1, 2))                 # NCHW


def reference(x, g1, b1, m1, v1, w1, g2, b2, m2, v2, w2, eps=1e-5):
    """Pure-JAX reference matching the PyTorch forward (eval mode)."""
    def bn(t, g, b, m, v):
        sh = (1, -1, 1, 1)
        return ((t - m.reshape(sh)) * jax.lax.rsqrt(v.reshape(sh) + eps)
                * g.reshape(sh) + b.reshape(sh))
    dn = ('NCHW', 'OIHW', 'NCHW')
    hi = jax.lax.Precision.HIGHEST
    h = jnp.maximum(bn(x, g1, b1, m1, v1), 0.0)
    h = jax.lax.conv_general_dilated(h, w1, (1, 1), 'VALID',
                                     dimension_numbers=dn, precision=hi)
    h = jnp.maximum(bn(h, g2, b2, m2, v2), 0.0)
    o = jax.lax.conv_general_dilated(h, w2, (1, 1), ((1, 1), (1, 1)),
                                     dimension_numbers=dn, precision=hi)
    return jnp.concatenate([x, o], axis=1)


if __name__ == "__main__":
    key = jax.random.PRNGKey(0)
    N, C, H, W = 2, 4, 16, 16            # input_size = 4
    growth_rate, num_bn = 4, 3
    Ci = num_bn * growth_rate            # inter_size = 12
    G = growth_rate

    ks = jax.random.split(key, 11)
    x = jax.random.normal(ks[0], (N, C, H, W), jnp.float32)
    # BatchNorm1 params (gamma, beta, running_mean, running_var)
    g1 = 1.0 + 0.1 * jax.random.normal(ks[1], (C,), jnp.float32)
    b1 = 0.1 * jax.random.normal(ks[2], (C,), jnp.float32)
    m1 = 0.1 * jax.random.normal(ks[3], (C,), jnp.float32)
    v1 = jax.random.uniform(ks[4], (C,), jnp.float32, 0.5, 1.5)
    # conv1 weight: [inter, in, 1, 1]
    w1 = 0.3 * jax.random.normal(ks[5], (Ci, C, 1, 1), jnp.float32)
    # BatchNorm2 params
    g2 = 1.0 + 0.1 * jax.random.normal(ks[6], (Ci,), jnp.float32)
    b2 = 0.1 * jax.random.normal(ks[7], (Ci,), jnp.float32)
    m2 = 0.1 * jax.random.normal(ks[8], (Ci,), jnp.float32)
    v2 = jax.random.uniform(ks[9], (Ci,), jnp.float32, 0.5, 1.5)
    # conv2 weight: [growth, inter, 3, 3]
    w2 = 0.1 * jax.random.normal(ks[10], (G, Ci, 3, 3), jnp.float32)

    out = bottleneck_block(x, g1, b1, m1, v1, w1, g2, b2, m2, v2, w2)
    out = jax.block_until_ready(out)
    assert out.shape == (N, C + G, H, W), out.shape

    ref = reference(x, g1, b1, m1, v1, w1, g2, b2, m2, v2, w2)
    assert jnp.allclose(out, ref, atol=1e-2, rtol=1e-2), \
        float(jnp.max(jnp.abs(out - ref)))

    print("KERNEL_OK")
</pallas_src>

<mosaic_0001>
module attributes {stable_mosaic.version = 11 : i64} {
  func.func @kernel(%arg0: i32, %arg1: memref<32x64xf32, #tpu.memory_space<vmem>>, %arg2: memref<1x64xf32, #tpu.memory_space<vmem>>, %arg3: memref<1x64xf32, #tpu.memory_space<vmem>>, %arg4: memref<64x192xf32, #tpu.memory_space<vmem>>, %arg5: memref<1x192xf32, #tpu.memory_space<vmem>>, %arg6: memref<576x64xf32, #tpu.memory_space<vmem>>, %arg7: memref<32x128xf32, #tpu.memory_space<vmem>>) attributes {dimension_semantics = [#tpu.dimension_semantics<parallel>], iteration_bounds = array<i64: 1>, scalar_prefetch = 0 : i64, scratch_operands = 0 : i64, tpu.core_type = #tpu.core_type<tc>, window_params = [{transform_indices = @transform_0, window_bounds = array<i64: 32, 64>}, {pipeline_mode = #tpu.pipeline_mode<synchronous>, transform_indices = @transform_1, window_bounds = array<i64: 1, 64>}, {pipeline_mode = #tpu.pipeline_mode<synchronous>, transform_indices = @transform_2, window_bounds = array<i64: 1, 64>}, {pipeline_mode = #tpu.pipeline_mode<synchronous>, transform_indices = @transform_3, window_bounds = array<i64: 64, 192>}, {pipeline_mode = #tpu.pipeline_mode<synchronous>, transform_indices = @transform_4, window_bounds = array<i64: 1, 192>}, {pipeline_mode = #tpu.pipeline_mode<synchronous>, transform_indices = @transform_5, window_bounds = array<i64: 576, 64>}, {transform_indices = @transform_6, window_bounds = array<i64: 32, 128>}]} {
    %c0 = arith.constant 0 : index
    %c0_0 = arith.constant 0 : index
    %0 = vector.load %arg1[%c0, %c0_0] : memref<32x64xf32, #tpu.memory_space<vmem>>, vector<32x64xf32>
    %c0_1 = arith.constant 0 : index
    %c0_2 = arith.constant 0 : index
    %1 = vector.load %arg2[%c0_1, %c0_2] : memref<1x64xf32, #tpu.memory_space<vmem>>, vector<1x64xf32>
    %2 = vector.broadcast %1 : vector<1x64xf32> to vector<32x64xf32>
    %3 = arith.mulf %0, %2 : vector<32x64xf32>
    %c0_3 = arith.constant 0 : index
    %c0_4 = arith.constant 0 : index
    %4 = vector.load %arg3[%c0_3, %c0_4] : memref<1x64xf32, #tpu.memory_space<vmem>>, vector<1x64xf32>
    %5 = vector.broadcast %4 : vector<1x64xf32> to vector<32x64xf32>
    %6 = arith.addf %3, %5 : vector<32x64xf32>
    %cst = arith.constant 0.000000e+00 : f32
    %7 = vector.broadcast %cst : f32 to vector<32x64xf32>
    %8 = arith.maximumf %6, %7 : vector<32x64xf32>
    %c0_5 = arith.constant 0 : index
    %c0_6 = arith.constant 0 : index
    %9 = vector.load %arg4[%c0_5, %c0_6] : memref<64x192xf32, #tpu.memory_space<vmem>>, vector<64x192xf32>
    %cst_7 = arith.constant dense<0.000000e+00> : vector<32x192xf32>
    %10 = tpu.matmul %8, %9, %cst_7 {dimension_numbers = #tpu.dot_dimension_numbers<[1], [0], [0], [1], [0, 0, 1, 1], [], []>} : vector<32x64xf32>, vector<64x192xf32>, vector<32x192xf32> -> vector<32x192xf32>
    %c0_8 = arith.constant 0 : index
    %c0_9 = arith.constant 0 : index
    %11 = vector.load %arg5[%c0_8, %c0_9] : memref<1x192xf32, #tpu.memory_space<vmem>>, vector<1x192xf32>
    %12 = vector.broadcast %11 : vector<1x192xf32> to vector<32x192xf32>
    %13 = arith.addf %10, %12 : vector<32x192xf32>
    %cst_10 = arith.constant 0.000000e+00 : f32
    %14 = vector.broadcast %cst_10 : f32 to vector<32x192xf32>
    %15 = arith.maximumf %13, %14 : vector<32x192xf32>
    %16 = tpu.iota {dimensions = array<i32: 0>} : vector<32x1xi32>
    %c16_i32 = arith.constant 16 : i32
    %c0_i32 = arith.constant 0 : i32
    %17 = arith.cmpi eq, %c16_i32, %c0_i32 : i32
    %c1_i32 = arith.constant 1 : i32
    %18 = arith.select %17, %c1_i32, %c16_i32 : i32
    %19 = vector.broadcast %18 : i32 to vector<32x1xi32>
    %20 = arith.remsi %16, %19 : vector<32x1xi32>
    %c0_i32_11 = arith.constant 0 : i32
    %21 = vector.broadcast %c0_i32_11 : i32 to vector<32x1xi32>
    %22 = arith.cmpi ne, %20, %21 : vector<32x1xi32>
    %c0_i32_12 = arith.constant 0 : i32
    %23 = vector.broadcast %c0_i32_12 : i32 to vector<32x1xi32>
    %24 = arith.cmpi slt, %20, %23 : vector<32x1xi32>
    %c0_i32_13 = arith.constant 0 : i32
    %25 = arith.cmpi slt, %18, %c0_i32_13 : i32
    %26 = vector.broadcast %25 : i1 to vector<32x1xi1>
    %27 = vector.broadcast %26 : vector<32x1xi1> to vector<32x1xi1>
    %28 = arith.xori %24, %27 : vector<32x1xi1>
    %29 = arith.andi %28, %22 : vector<32x1xi1>
    %30 = vector.broadcast %18 : i32 to vector<32x1xi32>
    %31 = arith.addi %20, %30 : vector<32x1xi32>
    %32 = arith.select %29, %31, %20 : vector<32x1xi1>, vector<32x1xi32>
    %c1_i32_14 = arith.constant 1 : i32
    %33 = vector.broadcast %c1_i32_14 : i32 to vector<32x1xi32>
    %34 = arith.cmpi sge, %32, %33 : vector<32x1xi32>
    %c1_i32_15 = arith.constant 1 : i32
    %35 = tpu.dynamic_rotate %15 by %c1_i32_15 dim 0 : vector<32x192xf32>, i32 -> vector<32x192xf32>
    %cst_16 = arith.constant 0.000000e+00 : f32
    %36 = vector.shape_cast %34 : vector<32x1xi1> to vector<32x1xi1>
    %37 = vector.broadcast %36 : vector<32x1xi1> to vector<32x192xi1>
    %38 = vector.broadcast %cst_16 : f32 to vector<32x192xf32>
    %39 = arith.select %37, %35, %38 : vector<32x192xi1>, vector<32x192xf32>
    %c14_i32 = arith.constant 14 : i32
    %40 = vector.broadcast %c14_i32 : i32 to vector<32x1xi32>
    %41 = arith.cmpi sle, %32, %40 : vector<32x1xi32>
    %c31_i32 = arith.constant 31 : i32
    %42 = tpu.dynamic_rotate %15 by %c31_i32 dim 0 : vector<32x192xf32>, i32 -> vector<32x192xf32>
    %cst_17 = arith.constant 0.000000e+00 : f32
    %43 = vector.shape_cast %41 : vector<32x1xi1> to vector<32x1xi1>
    %44 = vector.broadcast %43 : vector<32x1xi1> to vector<32x192xi1>
    %45 = vector.broadcast %cst_17 : f32 to vector<32x192xf32>
    %46 = arith.select %44, %42, %45 : vector<32x192xi1>, vector<32x192xf32>
    %47 = tpu.concatenate %39, %15, %46 in 1 : vector<32x192xf32>, vector<32x192xf32>, vector<32x192xf32> -> vector<32x576xf32>
    %c0_18 = arith.constant 0 : index
    %c0_19 = arith.constant 0 : index
    %48 = vector.load %arg6[%c0_18, %c0_19] : memref<576x64xf32, #tpu.memory_space<vmem>>, vector<576x64xf32>
    %cst_20 = arith.constant dense<0.000000e+00> : vector<32x64xf32>
    %49 = tpu.matmul %47, %48, %cst_20 {dimension_numbers = #tpu.dot_dimension_numbers<[1], [0], [0], [1], [0, 0, 1, 1], [], []>} : vector<32x576xf32>, vector<576x64xf32>, vector<32x64xf32> -> vector<32x64xf32>
    %50 = tpu.concatenate %0, %49 in 1 : vector<32x64xf32>, vector<32x64xf32> -> vector<32x128xf32>
    %c0_21 = arith.constant 0 : index
    %c0_22 = arith.constant 0 : index
    %51 = vector.load %arg7[%c0_21, %c0_22] : memref<32x128xf32, #tpu.memory_space<vmem>>, vector<32x128xf32>
    tpu.vector_store %arg7[%c0_21, %c0_22], %50 {strides = array<i32>} : memref<32x128xf32, #tpu.memory_space<vmem>>, vector<32x128xf32>,
    return
  }
  func.func @transform_0(%arg0: i32) -> (i32, i32) {
    %c0_i32 = arith.constant 0 : i32
    %c0_i32_0 = arith.constant 0 : i32
    return %arg0, %c0_i32 : i32, i32
  }
  func.func @transform_1(%arg0: i32) -> (i32, i32) {
    %c0_i32 = arith.constant 0 : i32
    %c0_i32_0 = arith.constant 0 : i32
    %c0_i32_1 = arith.constant 0 : i32
    return %c0_i32, %c0_i32_0 : i32, i32
  }
  func.func @transform_2(%arg0: i32) -> (i32, i32) {
    %c0_i32 = arith.constant 0 : i32
    %c0_i32_0 = arith.constant 0 : i32
    %c0_i32_1 = arith.constant 0 : i32
    return %c0_i32, %c0_i32_0 : i32, i32
  }
  func.func @transform_3(%arg0: i32) -> (i32, i32) {
    %c0_i32 = arith.constant 0 : i32
    %c0_i32_0 = arith.constant 0 : i32
    %c0_i32_1 = arith.constant 0 : i32
    return %c0_i32, %c0_i32_0 : i32, i32
  }
  func.func @transform_4(%arg0: i32) -> (i32, i32) {
    %c0_i32 = arith.constant 0 : i32
    %c0_i32_0 = arith.constant 0 : i32
    %c0_i32_1 = arith.constant 0 : i32
    return %c0_i32, %c0_i32_0 : i32, i32
  }
  func.func @transform_5(%arg0: i32) -> (i32, i32) {
    %c0_i32 = arith.constant 0 : i32
    %c0_i32_0 = arith.constant 0 : i32
    %c0_i32_1 = arith.constant 0 : i32
    return %c0_i32, %c0_i32_0 : i32, i32
  }
  func.func @transform_6(%arg0: i32) -> (i32, i32) {
    %c0_i32 = arith.constant 0 : i32
    %c0_i32_0 = arith.constant 0 : i32
    return %arg0, %c0_i32 : i32, i32
  }
}

</mosaic_0001>

<llo_original>
// kernel: tpu_custom_call.1
$region0: #{tpu_custom_call.1}
  #allocation0 [shape = 'u32[]', space=smem, size = 0x4, offset = 0x4, fixed_abs, tag = 'smem constant byte address 0x4 - core index']
  #allocation1 [shape = 'u32[144,128]{1,0:T(1,128)}', space=vmem, size = 0x12000, scoped, tag = 'internal scratch']
  %s0 = inlined_call_operand.vmem [shape: f32[32,64], index: 0, kind: input, shape index: {}]
  %s1 = inlined_call_operand.vmem [shape: f32[1,64], index: 1, kind: input, shape index: {}]
  %s2 = inlined_call_operand.vmem [shape: f32[1,64], index: 2, kind: input, shape index: {}]
  %s3 = inlined_call_operand.vmem [shape: f32[64,192], index: 3, kind: input, shape index: {}]
  %s4 = inlined_call_operand.vmem [shape: f32[1,192], index: 4, kind: input, shape index: {}]
  %s5 = inlined_call_operand.vmem [shape: f32[576,64], index: 5, kind: input, shape index: {}]
  %s6 = inlined_call_operand.hbm [shape: f32[32,128], index: 6, kind: output, shape index: {}]
  %s7 = sld [smem:[#allocation0]]
  $region34: #{tpu_custom_call.1} parent=0
    _
  %s9 = ssub.s32 1, %s7
  %s10 = scalar_select 0, %s9, %s7
  $region1: #{tpu_custom_call.1} parent=0
    #allocation2 [shape = 'u8[16384]{0}', space=vmem, size = 0x4000, scoped, tag = 'output window, operand 0, single buffered']
    #allocation3 [shape = 's32[1]{0}', space=sflag, size = 0x4, scoped, tag = 'scoped memory for tpu_custom_call.1']
    %11 = vsyncpa [#allocation3], 0
    // Predicated region
    $region2: #{tpu_custom_call.1} parent=1 // pred_check
      _
    $region3: #{tpu_custom_call.1} parent=1 // pred_check_branch
      %13 = sbr.rel (0) target = $region5
    $region4: #{tpu_custom_call.1} parent=1 // pred_region
      _
    $region5: #{tpu_custom_call.1} parent=1 // pred_fallthru
      _
    // Predicated region
    $region6: #{tpu_custom_call.1} parent=1 // pred_check
      _
    $region7: #{tpu_custom_call.1} parent=1 // pred_check_branch
      %15 = sbr.rel (0) target = $region9
    $region8: #{tpu_custom_call.1} parent=1 // pred_region
      _
    $region9: #{tpu_custom_call.1} parent=1 // pred_fallthru
      _
    // Predicated region
    $region10: #{tpu_custom_call.1} parent=1 // pred_check
      _
    $region11: #{tpu_custom_call.1} parent=1 // pred_check_branch
      %17 = sbr.rel (0) target = $region13
    $region12: #{tpu_custom_call.1} parent=1 // pred_region
      _
    $region13: #{tpu_custom_call.1} parent=1 // pred_fallthru
      _
    // Predicated region
    $region14: #{tpu_custom_call.1} parent=1 // pred_check
      _
    $region15: #{tpu_custom_call.1} parent=1 // pred_check_branch
      %19 = sbr.rel (0) target = $region17
    $region16: #{tpu_custom_call.1} parent=1 // pred_region
      _
    $region17: #{tpu_custom_call.1} parent=1 // pred_fallthru
      _
    // Predicated region
    $region18: #{tpu_custom_call.1} parent=1 // pred_check
      _
    $region19: #{tpu_custom_call.1} parent=1 // pred_check_branch
      %21 = sbr.rel (0) target = $region21
    $region20: #{tpu_custom_call.1} parent=1 // pred_region
      _
    $region21: #{tpu_custom_call.1} parent=1 // pred_fallthru
      _
    // Predicated region
    $region22: #{tpu_custom_call.1} parent=1 // pred_check
      _
    $region23: #{tpu_custom_call.1} parent=1 // pred_check_branch
      %23 = sbr.rel (0) target = $region25
    $region24: #{tpu_custom_call.1} parent=1 // pred_region
      _
    $region25: #{tpu_custom_call.1} parent=1 // pred_fallthru
      _
    %v24 = vld [vmem:[%s0] sm:$0xff]
    %v25 = vld [vmem:[%s0 + $0x8] sm:$0xff]
    %v26 = vld [vmem:[%s0 + $0x10] sm:$0xff]
    %v27 = vld [vmem:[%s0 + $0x18] sm:$0xff]
    %v28 = vld [vmem:[%s1] sm:$0x1]
    %v30 = vlaneseq
    %v31 = vshrl.u32 %v30, 7
    %v32 = vsub.s32 0, %v31
    %v33 = vrot.slane %v28, %v32
    %v35 = vmul.f32 %v24, %v33
    %v36 = vmul.f32 %v25, %v33
    %v37 = vmul.f32 %v26, %v33
    %v38 = vmul.f32 %v27, %v33
    %v39 = vld [vmem:[%s2] sm:$0x1]
    %v41 = vlaneseq
    %v42 = vshrl.u32 %v41, 7
    %v43 = vsub.s32 0, %v42
    %v44 = vrot.slane %v39, %v43
    %v46 = vadd.f32 %v35, %v44
    %v47 = vadd.f32 %v36, %v44
    %v48 = vadd.f32 %v37, %v44
    %v49 = vadd.f32 %v38, %v44
    %v50 = vmax.f32 %v46, 0.0
    %v51 = vmax.f32 %v47, 0.0
    %v52 = vmax.f32 %v48, 0.0
    %v53 = vmax.f32 %v49, 0.0
    %v54 = vld [vmem:[%s3] sm:$0xff]
    %v55 = vld [vmem:[%s3 + $0x8] sm:$0xff]
    %v56 = vld [vmem:[%s3 + $0x10] sm:$0xff]
    %v57 = vld [vmem:[%s3 + $0x18] sm:$0xff]
    %v58 = vld [vmem:[%s3 + $0x20] sm:$0xff]
    %v59 = vld [vmem:[%s3 + $0x28] sm:$0xff]
    %v60 = vld [vmem:[%s3 + $0x30] sm:$0xff]
    %v61 = vld [vmem:[%s3 + $0x38] sm:$0xff]
    %v62 = vld [vmem:[%s3 + $0x40] sm:$0xff]
    %v63 = vld [vmem:[%s3 + $0x48] sm:$0xff]
    %v64 = vld [vmem:[%s3 + $0x50] sm:$0xff]
    %v65 = vld [vmem:[%s3 + $0x58] sm:$0xff]
    %v66 = vld [vmem:[%s3 + $0x60] sm:$0xff]
    %v67 = vld [vmem:[%s3 + $0x68] sm:$0xff]
    %v68 = vld [vmem:[%s3 + $0x70] sm:$0xff]
    %v69 = vld [vmem:[%s3 + $0x78] sm:$0xff]
    %v70 = vld [vmem:[%s4] sm:$0x3]
    %v72 = vlaneseq
    %v73 = vshrl.u32 %v72, 7
    %v74 = vsub.s32 0, %v73
    %v75 = vrot.slane %v70, %v74
    %v76 = vlaneseq
    %v77 = vshrl.u32 %v76, 7
    %v78 = vsub.s32 1, %v77
    %v79 = vrot.slane %v70, %v78
    %vm82 = vcmask 523264
    %v84 = vsel %vm82, %v50, 0
    %v87 = vsel %vm82, %v51, 0
    %v90 = vsel %vm82, %v52, 0
    %v93 = vsel %vm82, %v53, 0
    %95 = vmatprep.subr.mxu0 %v55
    %96 = vmatpush1.msra.mxu0 %v54
    %97 = vmatprep.subr.mxu0 %v57
    %98 = vmatpush1.msra.mxu0 %v56
    %99 = vmatprep.subr.mxu0 %v59
    %100 = vmatpush1.msra.mxu0 %v58
    %101 = vmatprep.subr.mxu0 %v61
    %102 = vmatpush1.msra.mxu0 %v60
    %103 = vmatprep.subr.mxu0 %v63
    %104 = vmatpush1.msra.mxu0 %v62
    %105 = vmatprep.subr.mxu0 %v65
    %106 = vmatpush1.msra.mxu0 %v64
    %107 = vmatprep.subr.mxu0 %v67
    %108 = vmatpush1.msra.mxu0 %v66
    %109 = vmatprep.subr.mxu0 %v69
    %110 = vmatpush1.msra.mxu0 %v68
    %111 = vmatprep.subr.mxu0 0.0
    %112 = vmatpush1.msra.mxu0 0.0
    %113 = vmatprep.subr.mxu0 0.0
    %114 = vmatpush1.msra.mxu0 0.0
    %115 = vmatprep.subr.mxu0 0.0
    %116 = vmatpush1.msra.mxu0 0.0
    %117 = vmatprep.subr.mxu0 0.0
    %118 = vmatpush1.msra.mxu0 0.0
    %119 = vmatprep.subr.mxu0 0.0
    %120 = vmatpush1.msra.mxu0 0.0
    %121 = vmatprep.subr.mxu0 0.0
    %122 = vmatpush1.msra.mxu0 0.0
    %123 = vmatprep.subr.mxu0 0.0
    %124 = vmatpush1.msra.mxu0 0.0
    %125 = vmatprep.subr.mxu0 0.0
    %126 = vmatpush1.msra.mxu0 0.0
    %127 = vmatprep.subr.mxu0 0.0
    %128 = vmatpush1.msra.mxu0 0.0
    %129 = vmatprep.subr.mxu0 0.0
    %130 = vmatpush1.msra.mxu0 0.0
    %131 = vmatprep.subr.mxu0 0.0
    %132 = vmatpush1.msra.mxu0 0.0
    %133 = vmatprep.subr.mxu0 0.0
    %134 = vmatpush1.msra.mxu0 0.0
    %135 = vmatprep.subr.mxu0 0.0
    %136 = vmatpush1.msra.mxu0 0.0
    %137 = vmatprep.subr.mxu0 0.0
    %138 = vmatpush1.msra.mxu0 0.0
    %139 = vmatprep.subr.mxu0 0.0
    %140 = vmatpush1.msra.mxu0 0.0
    %141 = vmatprep.subr.mxu0 0.0
    %142 = vmatpush1.msra.mxu0 0.0
    %143 = vmatprep.subr.mxu0 0.0
    %144 = vmatpush1.msra.mxu0 0.0
    %145 = vmatprep.subr.mxu0 0.0
    %146 = vmatpush1.msra.mxu0 0.0
    %147 = vmatprep.subr.mxu0 0.0
    %148 = vmatpush1.msra.mxu0 0.0
    %149 = vmatprep.subr.mxu0 0.0
    %150 = vmatpush1.msra.mxu0 0.0
    %151 = vmatprep.subr.mxu0 0.0
    %152 = vmatpush1.msra.mxu0 0.0
    %153 = vmatprep.subr.mxu0 0.0
    %154 = vmatpush1.msra.mxu0 0.0
    %155 = vmatprep.subr.mxu0 0.0
    %156 = vmatpush1.msra.mxu0 0.0
    %157 = vmatprep.subr.mxu0 0.0
    %158 = vmatpush1.msra.mxu0 0.0
    %159 = vmatprep.mubr.f32.mxu0 0.0
    %160 = vmatmul.mubr.f32.gmra.mrb[0].mxu0 %v84
    %v161 = vpop.f32.mrb[0].mxu0
    %v162 = vadd.f32 %v75, %v161
    %v163 = vpop.f32.mrb[0].mxu0
    %v164 = vadd.f32 %v79, %v163
    %165 = vmatprep.mubr.f32.mxu0 0.0
    %166 = vmatmul.mubr.f32.gmra.mrb[0].mxu0 %v87
    %v167 = vpop.f32.mrb[0].mxu0
    %v168 = vadd.f32 %v75, %v167
    %v169 = vpop.f32.mrb[0].mxu0
    %v170 = vadd.f32 %v79, %v169
    %171 = vmatprep.mubr.f32.mxu0 0.0
    %172 = vmatmul.mubr.f32.gmra.mrb[0].mxu0 %v90
    %v173 = vpop.f32.mrb[0].mxu0
    %v174 = vadd.f32 %v75, %v173
    %v175 = vpop.f32.mrb[0].mxu0
    %v176 = vadd.f32 %v79, %v175
    %177 = vmatprep.mubr.f32.mxu0 0.0
    %178 = vmatmul.mubr.f32.gmra.mrb[0].mxu0 %v93
    %v179 = vpop.f32.mrb[0].mxu0
    %v180 = vadd.f32 %v75, %v179
    %v181 = vpop.f32.mrb[0].mxu0
    %v182 = vadd.f32 %v79, %v181
    %183 = vdwg.mxu0
    %v184 = vmax.f32 %v162, 0.0
    %v185 = vmax.f32 %v164, 0.0
    %v186 = vmax.f32 %v168, 0.0
    %v187 = vmax.f32 %v170, 0.0
    %v188 = vmax.f32 %v174, 0.0
    %v189 = vmax.f32 %v176, 0.0
    %v190 = vmax.f32 %v180, 0.0
    %v191 = vmax.f32 %v182, 0.0
    %v192 = vlaneseq
    %v193 = vshrl.u32 %v192, 7
    %v194 = vadd.s32 %v193, 8
    %v195 = vadd.s32 %v193, 16
    %v196 = vadd.s32 %v193, 24
    %vm197 = vcmp.lt.s32.totalorder %v193, 0
    %v198 = vsub.s32 0, %v193
    %v199 = vsel %vm197, %v198, %v193
    %v200 = vshrl.u32 %v199, 4
    %v201 = vand.u32 %v199, 15
    %v202 = vsub.s32 0, %v201
    %v203 = vsel %vm197, %v202, %v201
    %vm204 = vcmp.lt.s32.totalorder %v194, 0
    %v205 = vsub.s32 0, %v194
    %v206 = vsel %vm204, %v205, %v194
    %v207 = vshrl.u32 %v206, 4
    %v208 = vand.u32 %v206, 15
    %v209 = vsub.s32 0, %v208
    %v210 = vsel %vm204, %v209, %v208
    %vm211 = vcmp.lt.s32.totalorder %v195, 0
    %v212 = vsub.s32 0, %v195
    %v213 = vsel %vm211, %v212, %v195
    %v214 = vshrl.u32 %v213, 4
    %v215 = vand.u32 %v213, 15
    %v216 = vsub.s32 0, %v215
    %v217 = vsel %vm211, %v216, %v215
    %vm218 = vcmp.lt.s32.totalorder %v196, 0
    %v219 = vsub.s32 0, %v196
    %v220 = vsel %vm218, %v219, %v196
    %v221 = vshrl.u32 %v220, 4
    %v222 = vand.u32 %v220, 15
    %v223 = vsub.s32 0, %v222
    %v224 = vsel %vm218, %v223, %v222
    %vm225 = vcmp.ne.s32.totalorder %v203, 0
    %vm226 = vcmp.ne.s32.totalorder %v210, 0
    %vm227 = vcmp.ne.s32.totalorder %v217, 0
    %vm228 = vcmp.ne.s32.totalorder %v224, 0
    %vm229 = vcmp.lt.s32.totalorder %v203, 0
    %vm230 = vcmp.lt.s32.totalorder %v210, 0
    %vm231 = vcmp.lt.s32.totalorder %v217, 0
    %vm232 = vcmp.lt.s32.totalorder %v224, 0
    %vm233 = vmand %vm229, %vm225
    %vm234 = vmand %vm230, %vm226
    %vm235 = vmand %vm231, %vm227
    %vm236 = vmand %vm232, %vm228
    %v237 = vadd.s32 %v203, 16
    %v238 = vadd.s32 %v210, 16
    %v239 = vadd.s32 %v217, 16
    %v240 = vadd.s32 %v224, 16
    %v241 = vsel %vm233, %v237, %v203
    %v242 = vsel %vm234, %v238, %v210
    %v243 = vsel %vm235, %v239, %v217
    %v244 = vsel %vm236, %v240, %v224
    %vm245 = vcmp.ge.s32.totalorder %v241, 1
    %vm246 = vcmp.ge.s32.totalorder %v242, 1
    %vm247 = vcmp.ge.s32.totalorder %v243, 1
    %vm248 = vcmp.ge.s32.totalorder %v244, 1
    %v249 = vrot.slane %v184, 7
    %v250 = vrot.slane %v185, 7
    %v251 = vrot.slane %v186, 7
    %v252 = vrot.slane %v187, 7
    %v253 = vrot.slane %v188, 7
    %v254 = vrot.slane %v189, 7
    %v255 = vrot.slane %v190, 7
    %v256 = vrot.slane %v191, 7
    %vm257 = vcmp.lt.s32.totalorder %v193, 1
    %v258 = vsel %vm257, %v253, %v255
    %v259 = vsel %vm257, %v254, %v256
    %v260 = vsel %vm257, %v251, %v253
    %v261 = vsel %vm257, %v252, %v254
    %v262 = vsel %vm257, %v249, %v251
    %v263 = vsel %vm257, %v250, %v252
    %v264 = vsel %vm257, %v255, %v249
    %v265 = vsel %vm257, %v256, %v250
    %v266 = vsel %vm245, 1, 0
    %v267 = vsel %vm246, 1, 0
    %v268 = vsel %vm247, 1, 0
    %v269 = vsel %vm248, 1, 0
    %vm270 = vcmp.eq.s32.totalorder %v266, 1
    %vm271 = vcmp.eq.s32.totalorder %v267, 1
    %vm272 = vcmp.eq.s32.totalorder %v268, 1
    %vm273 = vcmp.eq.s32.totalorder %v269, 1
    %v274 = vsel %vm270, %v264, 0.0
    %v275 = vsel %vm270, %v265, 0.0
    %v276 = vsel %vm271, %v262, 0.0
    %v277 = vsel %vm271, %v263, 0.0
    %v278 = vsel %vm272, %v260, 0.0
    %v279 = vsel %vm272, %v261, 0.0
    %v280 = vsel %vm273, %v258, 0.0
    %v281 = vsel %vm273, %v259, 0.0
    %vm282 = vcmp.le.s32.totalorder %v241, 14
    %vm283 = vcmp.le.s32.totalorder %v242, 14
    %vm284 = vcmp.le.s32.totalorder %v243, 14
    %vm285 = vcmp.le.s32.totalorder %v244, 14
    %v286 = vrot.slane %v184, 1
    %v287 = vrot.slane %v185, 1
    %v288 = vrot.slane %v186, 1
    %v289 = vrot.slane %v187, 1
    %v290 = vrot.slane %v188, 1
    %v291 = vrot.slane %v189, 1
    %v292 = vrot.slane %v190, 1
    %v293 = vrot.slane %v191, 1
    %vm294 = vcmp.lt.s32.totalorder %v193, 7
    %v295 = vsel %vm294, %v290, %v292
    %v296 = vsel %vm294, %v291, %v293
    %v297 = vsel %vm294, %v288, %v290
    %v298 = vsel %vm294, %v289, %v291
    %v299 = vsel %vm294, %v286, %v288
    %v300 = vsel %vm294, %v287, %v289
    %v301 = vsel %vm294, %v292, %v286
    %v302 = vsel %vm294, %v293, %v287
    %v303 = vsel %vm282, 1, 0
    %v304 = vsel %vm283, 1, 0
    %v305 = vsel %vm284, 1, 0
    %v306 = vsel %vm285, 1, 0
    %vm307 = vcmp.eq.s32.totalorder %v303, 1
    %vm308 = vcmp.eq.s32.totalorder %v304, 1
    %vm309 = vcmp.eq.s32.totalorder %v305, 1
    %vm310 = vcmp.eq.s32.totalorder %v306, 1
    %v311 = vsel %vm307, %v299, 0.0
    %v312 = vsel %vm307, %v300, 0.0
    %v313 = vsel %vm308, %v297, 0.0
    %v314 = vsel %vm308, %v298, 0.0
    %v315 = vsel %vm309, %v295, 0.0
    %v316 = vsel %vm309, %v296, 0.0
    %v317 = vsel %vm310, %v301, 0.0
    %v318 = vsel %vm310, %v302, 0.0
    %327 = vrot.lane.b32.xlu0 %v184, 64
    %v328 = vpop.permute.xlu0 %327
    %329 = vrot.lane.b32.xlu0 %v185, 64
    %v330 = vpop.permute.xlu0 %329
    %331 = vrot.lane.b32.xlu0 %v186, 64
    %v332 = vpop.permute.xlu0 %331
    %333 = vrot.lane.b32.xlu0 %v187, 64
    %v334 = vpop.permute.xlu0 %333
    %335 = vrot.lane.b32.xlu0 %v188, 64
    %v336 = vpop.permute.xlu0 %335
    %337 = vrot.lane.b32.xlu0 %v189, 64
    %v338 = vpop.permute.xlu0 %337
    %339 = vrot.lane.b32.xlu0 %v190, 64
    %v340 = vpop.permute.xlu0 %339
    %341 = vrot.lane.b32.xlu0 %v191, 64
    %v342 = vpop.permute.xlu0 %341
    %v343 = vsel %vm82, %v328, %v330
    %v344 = vsel %vm82, %v332, %v334
    %v345 = vsel %vm82, %v336, %v338
    %v346 = vsel %vm82, %v340, %v342
    %v355 = vsel %vm82, %v275, %v328
    %v356 = vsel %vm82, %v277, %v332
    %v357 = vsel %vm82, %v279, %v336
    %v358 = vsel %vm82, %v281, %v340
    %v359 = vld [vmem:[%s5] sm:$0xff]
    %v360 = vld [vmem:[%s5 + $0x8] sm:$0xff]
    %v361 = vld [vmem:[%s5 + $0x10] sm:$0xff]
    %v362 = vld [vmem:[%s5 + $0x18] sm:$0xff]
    %v363 = vld [vmem:[%s5 + $0x20] sm:$0xff]
    %v364 = vld [vmem:[%s5 + $0x28] sm:$0xff]
    %v365 = vld [vmem:[%s5 + $0x30] sm:$0xff]
    %v366 = vld [vmem:[%s5 + $0x38] sm:$0xff]
    %v367 = vld [vmem:[%s5 + $0x40] sm:$0xff]
    %v368 = vld [vmem:[%s5 + $0x48] sm:$0xff]
    %v369 = vld [vmem:[%s5 + $0x50] sm:$0xff]
    %v370 = vld [vmem:[%s5 + $0x58] sm:$0xff]
    %v371 = vld [vmem:[%s5 + $0x60] sm:$0xff]
    %v372 = vld [vmem:[%s5 + $0x68] sm:$0xff]
    %v373 = vld [vmem:[%s5 + $0x70] sm:$0xff]
    %v374 = vld [vmem:[%s5 + $0x78] sm:$0xff]
    %v375 = vld [vmem:[%s5 + $0x80] sm:$0xff]
    %v376 = vld [vmem:[%s5 + $0x88] sm:$0xff]
    %v377 = vld [vmem:[%s5 + $0x90] sm:$0xff]
    %v378 = vld [vmem:[%s5 + $0x98] sm:$0xff]
    %v379 = vld [vmem:[%s5 + $0xa0] sm:$0xff]
    %v380 = vld [vmem:[%s5 + $0xa8] sm:$0xff]
    %v381 = vld [vmem:[%s5 + $0xb0] sm:$0xff]
    %v382 = vld [vmem:[%s5 + $0xb8] sm:$0xff]
    %v383 = vld [vmem:[%s5 + $0xc0] sm:$0xff]
    %v384 = vld [vmem:[%s5 + $0xc8] sm:$0xff]
    %v385 = vld [vmem:[%s5 + $0xd0] sm:$0xff]
    %v386 = vld [vmem:[%s5 + $0xd8] sm:$0xff]
    %v387 = vld [vmem:[%s5 + $0xe0] sm:$0xff]
    %v388 = vld [vmem:[%s5 + $0xe8] sm:$0xff]
    %v389 = vld [vmem:[%s5 + $0xf0] sm:$0xff]
    %v390 = vld [vmem:[%s5 + $0xf8] sm:$0xff]
    %v391 = vld [vmem:[%s5 + $0x100] sm:$0xff]
    %v392 = vld [vmem:[%s5 + $0x108] sm:$0xff]
    %v393 = vld [vmem:[%s5 + $0x110] sm:$0xff]
    %v394 = vld [vmem:[%s5 + $0x118] sm:$0xff]
    %v395 = vld [vmem:[%s5 + $0x120] sm:$0xff]
    %v396 = vld [vmem:[%s5 + $0x128] sm:$0xff]
    %v397 = vld [vmem:[%s5 + $0x130] sm:$0xff]
    %v398 = vld [vmem:[%s5 + $0x138] sm:$0xff]
    %v399 = vld [vmem:[%s5 + $0x140] sm:$0xff]
    %v400 = vld [vmem:[%s5 + $0x148] sm:$0xff]
    %v401 = vld [vmem:[%s5 + $0x150] sm:$0xff]
    %v402 = vld [vmem:[%s5 + $0x158] sm:$0xff]
    %v403 = vld [vmem:[%s5 + $0x160] sm:$0xff]
    %v404 = vld [vmem:[%s5 + $0x168] sm:$0xff]
    %v405 = vld [vmem:[%s5 + $0x170] sm:$0xff]
    %v406 = vld [vmem:[%s5 + $0x178] sm:$0xff]
    %v407 = vld [vmem:[%s5 + $0x180] sm:$0xff]
    %v408 = vld [vmem:[%s5 + $0x188] sm:$0xff]
    %v409 = vld [vmem:[%s5 + $0x190] sm:$0xff]
    %v410 = vld [vmem:[%s5 + $0x198] sm:$0xff]
    %v411 = vld [vmem:[%s5 + $0x1a0] sm:$0xff]
    %v412 = vld [vmem:[%s5 + $0x1a8] sm:$0xff]
    %v413 = vld [vmem:[%s5 + $0x1b0] sm:$0xff]
    %v414 = vld [vmem:[%s5 + $0x1b8] sm:$0xff]
    %v415 = vld [vmem:[%s5 + $0x1c0] sm:$0xff]
    %v416 = vld [vmem:[%s5 + $0x1c8] sm:$0xff]
    %v417 = vld [vmem:[%s5 + $0x1d0] sm:$0xff]
    %v418 = vld [vmem:[%s5 + $0x1d8] sm:$0xff]
    %v419 = vld [vmem:[%s5 + $0x1e0] sm:$0xff]
    %v420 = vld [vmem:[%s5 + $0x1e8] sm:$0xff]
    %v421 = vld [vmem:[%s5 + $0x1f0] sm:$0xff]
    %v422 = vld [vmem:[%s5 + $0x1f8] sm:$0xff]
    %v423 = vld [vmem:[%s5 + $0x200] sm:$0xff]
    %v424 = vld [vmem:[%s5 + $0x208] sm:$0xff]
    %v425 = vld [vmem:[%s5 + $0x210] sm:$0xff]
    %v426 = vld [vmem:[%s5 + $0x218] sm:$0xff]
    %v427 = vld [vmem:[%s5 + $0x220] sm:$0xff]
    %v428 = vld [vmem:[%s5 + $0x228] sm:$0xff]
    %v429 = vld [vmem:[%s5 + $0x230] sm:$0xff]
    %v430 = vld [vmem:[%s5 + $0x238] sm:$0xff]
    %v432 = vsel %vm82, %v312, 0
    %v435 = vsel %vm82, %v314, 0
    %v438 = vsel %vm82, %v316, 0
    %v441 = vsel %vm82, %v318, 0
    %443 = vmatprep.subr.mxu0 0.0
    %444 = vmatpush1.msra.mxu0 %v359
    %445 = vmatprep.subr.mxu0 0.0
    %446 = vmatpush1.msra.mxu0 %v360
    %447 = vmatprep.subr.mxu0 0.0
    %448 = vmatpush1.msra.mxu0 %v361
    %449 = vmatprep.subr.mxu0 0.0
    %450 = vmatpush1.msra.mxu0 %v362
    %451 = vmatprep.subr.mxu0 0.0
    %452 = vmatpush1.msra.mxu0 %v363
    %453 = vmatprep.subr.mxu0 0.0
    %454 = vmatpush1.msra.mxu0 %v364
    %455 = vmatprep.subr.mxu0 0.0
    %456 = vmatpush1.msra.mxu0 %v365
    %457 = vmatprep.subr.mxu0 0.0
    %458 = vmatpush1.msra.mxu0 %v366
    %459 = vmatprep.subr.mxu0 0.0
    %460 = vmatpush1.msra.mxu0 %v367
    %461 = vmatprep.subr.mxu0 0.0
    %462 = vmatpush1.msra.mxu0 %v368
    %463 = vmatprep.subr.mxu0 0.0
    %464 = vmatpush1.msra.mxu0 %v369
    %465 = vmatprep.subr.mxu0 0.0
    %466 = vmatpush1.msra.mxu0 %v370
    %467 = vmatprep.subr.mxu0 0.0
    %468 = vmatpush1.msra.mxu0 %v371
    %469 = vmatprep.subr.mxu0 0.0
    %470 = vmatpush1.msra.mxu0 %v372
    %471 = vmatprep.subr.mxu0 0.0
    %472 = vmatpush1.msra.mxu0 %v373
    %473 = vmatprep.subr.mxu0 0.0
    %474 = vmatpush1.msra.mxu0 %v374
    %475 = vmatprep.subr.mxu0 0.0
    %476 = vmatpush1.msra.mxu0 %v375
    %477 = vmatprep.subr.mxu0 0.0
    %478 = vmatpush1.msra.mxu0 %v376
    %479 = vmatprep.subr.mxu0 0.0
    %480 = vmatpush1.msra.mxu0 %v377
    %481 = vmatprep.subr.mxu0 0.0
    %482 = vmatpush1.msra.mxu0 %v378
    %483 = vmatprep.subr.mxu0 0.0
    %484 = vmatpush1.msra.mxu0 %v379
    %485 = vmatprep.subr.mxu0 0.0
    %486 = vmatpush1.msra.mxu0 %v380
    %487 = vmatprep.subr.mxu0 0.0
    %488 = vmatpush1.msra.mxu0 %v381
    %489 = vmatprep.subr.mxu0 0.0
    %490 = vmatpush1.msra.mxu0 %v382
    %491 = vmatprep.subr.mxu0 0.0
    %492 = vmatpush1.msra.mxu0 %v383
    %493 = vmatprep.subr.mxu0 0.0
    %494 = vmatpush1.msra.mxu0 %v384
    %495 = vmatprep.subr.mxu0 0.0
    %496 = vmatpush1.msra.mxu0 %v385
    %497 = vmatprep.subr.mxu0 0.0
    %498 = vmatpush1.msra.mxu0 %v386
    %499 = vmatprep.subr.mxu0 0.0
    %500 = vmatpush1.msra.mxu0 %v387
    %501 = vmatprep.subr.mxu0 0.0
    %502 = vmatpush1.msra.mxu0 %v388
    %503 = vmatprep.subr.mxu0 0.0
    %504 = vmatpush1.msra.mxu0 %v389
    %505 = vmatprep.subr.mxu0 0.0
    %506 = vmatpush1.msra.mxu0 %v390
    %507 = vmatprep.mubr.f32.mxu0 %v355
    %508 = vmatmul.mubr.f32.gmra.mrb[0].mxu0 %v274
    %v509 = vpop.f32.mrb[0].mxu0
    %v510 = vadd.f32 0.0, %v509
    %v511 = vpop.f32.mrb[0].mxu0
    %512 = vmatprep.mubr.f32.mxu0 %v356
    %513 = vmatmul.mubr.f32.gmra.mrb[0].mxu0 %v276
    %v514 = vpop.f32.mrb[0].mxu0
    %v515 = vadd.f32 0.0, %v514
    %v516 = vpop.f32.mrb[0].mxu0
    %517 = vmatprep.mubr.f32.mxu0 %v357
    %518 = vmatmul.mubr.f32.gmra.mrb[0].mxu0 %v278
    %v519 = vpop.f32.mrb[0].mxu0
    %v520 = vadd.f32 0.0, %v519
    %v521 = vpop.f32.mrb[0].mxu0
    %522 = vmatprep.mubr.f32.mxu0 %v358
    %523 = vmatmul.mubr.f32.gmra.mrb[0].mxu0 %v280
    %v524 = vpop.f32.mrb[0].mxu0
    %v525 = vadd.f32 0.0, %v524
    %v526 = vpop.f32.mrb[0].mxu0
    %527 = vdwg.mxu0
    %528 = vmatprep.subr.mxu0 0.0
    %529 = vmatpush1.msra.mxu0 %v391
    %530 = vmatprep.subr.mxu0 0.0
    %531 = vmatpush1.msra.mxu0 %v392
    %532 = vmatprep.subr.mxu0 0.0
    %533 = vmatpush1.msra.mxu0 %v393
    %534 = vmatprep.subr.mxu0 0.0
    %535 = vmatpush1.msra.mxu0 %v394
    %536 = vmatprep.subr.mxu0 0.0
    %537 = vmatpush1.msra.mxu0 %v395
    %538 = vmatprep.subr.mxu0 0.0
    %539 = vmatpush1.msra.mxu0 %v396
    %540 = vmatprep.subr.mxu0 0.0
    %541 = vmatpush1.msra.mxu0 %v397
    %542 = vmatprep.subr.mxu0 0.0
    %543 = vmatpush1.msra.mxu0 %v398
    %544 = vmatprep.subr.mxu0 0.0
    %545 = vmatpush1.msra.mxu0 %v399
    %546 = vmatprep.subr.mxu0 0.0
    %547 = vmatpush1.msra.mxu0 %v400
    %548 = vmatprep.subr.mxu0 0.0
    %549 = vmatpush1.msra.mxu0 %v401
    %550 = vmatprep.subr.mxu0 0.0
    %551 = vmatpush1.msra.mxu0 %v402
    %552 = vmatprep.subr.mxu0 0.0
    %553 = vmatpush1.msra.mxu0 %v403
    %554 = vmatprep.subr.mxu0 0.0
    %555 = vmatpush1.msra.mxu0 %v404
    %556 = vmatprep.subr.mxu0 0.0
    %557 = vmatpush1.msra.mxu0 %v405
    %558 = vmatprep.subr.mxu0 0.0
    %559 = vmatpush1.msra.mxu0 %v406
    %560 = vmatprep.subr.mxu0 0.0
    %561 = vmatpush1.msra.mxu0 %v407
    %562 = vmatprep.subr.mxu0 0.0
    %563 = vmatpush1.msra.mxu0 %v408
    %564 = vmatprep.subr.mxu0 0.0
    %565 = vmatpush1.msra.mxu0 %v409
    %566 = vmatprep.subr.mxu0 0.0
    %567 = vmatpush1.msra.mxu0 %v410
    %568 = vmatprep.subr.mxu0 0.0
    %569 = vmatpush1.msra.mxu0 %v411
    %570 = vmatprep.subr.mxu0 0.0
    %571 = vmatpush1.msra.mxu0 %v412
    %572 = vmatprep.subr.mxu0 0.0
    %573 = vmatpush1.msra.mxu0 %v413
    %574 = vmatprep.subr.mxu0 0.0
    %575 = vmatpush1.msra.mxu0 %v414
    %576 = vmatprep.subr.mxu0 0.0
    %577 = vmatpush1.msra.mxu0 %v415
    %578 = vmatprep.subr.mxu0 0.0
    %579 = vmatpush1.msra.mxu0 %v416
    %580 = vmatprep.subr.mxu0 0.0
    %581 = vmatpush1.msra.mxu0 %v417
    %582 = vmatprep.subr.mxu0 0.0
    %583 = vmatpush1.msra.mxu0 %v418
    %584 = vmatprep.subr.mxu0 0.0
    %585 = vmatpush1.msra.mxu0 %v419
    %586 = vmatprep.subr.mxu0 0.0
    %587 = vmatpush1.msra.mxu0 %v420
    %588 = vmatprep.subr.mxu0 0.0
    %589 = vmatpush1.msra.mxu0 %v421
    %590 = vmatprep.subr.mxu0 0.0
    %591 = vmatpush1.msra.mxu0 %v422
    %592 = vmatprep.mubr.f32.mxu0 %v311
    %593 = vmatmul.mubr.f32.gmra.mrb[0].mxu0 %v343
    %v594 = vpop.f32.mrb[0].mxu0
    %v595 = vadd.f32 %v510, %v594
    %v596 = vpop.f32.mrb[0].mxu0
    %597 = vmatprep.mubr.f32.mxu0 %v313
    %598 = vmatmul.mubr.f32.gmra.mrb[0].mxu0 %v344
    %v599 = vpop.f32.mrb[0].mxu0
    %v600 = vadd.f32 %v515, %v599
    %v601 = vpop.f32.mrb[0].mxu0
    %602 = vmatprep.mubr.f32.mxu0 %v315
    %603 = vmatmul.mubr.f32.gmra.mrb[0].mxu0 %v345
    %v604 = vpop.f32.mrb[0].mxu0
    %v605 = vadd.f32 %v520, %v604
    %v606 = vpop.f32.mrb[0].mxu0
    %607 = vmatprep.mubr.f32.mxu0 %v317
    %608 = vmatmul.mubr.f32.gmra.mrb[0].mxu0 %v346
    %v609 = vpop.f32.mrb[0].mxu0
    %v610 = vadd.f32 %v525, %v609
    %v611 = vpop.f32.mrb[0].mxu0
    %612 = vdwg.mxu0
    %613 = vmatprep.subr.mxu0 0.0
    %614 = vmatpush1.msra.mxu0 %v423
    %615 = vmatprep.subr.mxu0 0.0
    %616 = vmatpush1.msra.mxu0 %v424
    %617 = vmatprep.subr.mxu0 0.0
    %618 = vmatpush1.msra.mxu0 %v425
    %619 = vmatprep.subr.mxu0 0.0
    %620 = vmatpush1.msra.mxu0 %v426
    %621 = vmatprep.subr.mxu0 0.0
    %622 = vmatpush1.msra.mxu0 %v427
    %623 = vmatprep.subr.mxu0 0.0
    %624 = vmatpush1.msra.mxu0 %v428
    %625 = vmatprep.subr.mxu0 0.0
    %626 = vmatpush1.msra.mxu0 %v429
    %627 = vmatprep.subr.mxu0 0.0
    %628 = vmatpush1.msra.mxu0 %v430
    %629 = vmatprep.subr.mxu0 0.0
    %630 = vmatpush1.msra.mxu0 0.0
    %631 = vmatprep.subr.mxu0 0.0
    %632 = vmatpush1.msra.mxu0 0.0
    %633 = vmatprep.subr.mxu0 0.0
    %634 = vmatpush1.msra.mxu0 0.0
    %635 = vmatprep.subr.mxu0 0.0
    %636 = vmatpush1.msra.mxu0 0.0
    %637 = vmatprep.subr.mxu0 0.0
    %638 = vmatpush1.msra.mxu0 0.0
    %639 = vmatprep.subr.mxu0 0.0
    %640 = vmatpush1.msra.mxu0 0.0
    %641 = vmatprep.subr.mxu0 0.0
    %642 = vmatpush1.msra.mxu0 0.0
    %643 = vmatprep.subr.mxu0 0.0
    %644 = vmatpush1.msra.mxu0 0.0
    %645 = vmatprep.subr.mxu0 0.0
    %646 = vmatpush1.msra.mxu0 0.0
    %647 = vmatprep.subr.mxu0 0.0
    %648 = vmatpush1.msra.mxu0 0.0
    %649 = vmatprep.subr.mxu0 0.0
    %650 = vmatpush1.msra.mxu0 0.0
    %651 = vmatprep.subr.mxu0 0.0
    %652 = vmatpush1.msra.mxu0 0.0
    %653 = vmatprep.subr.mxu0 0.0
    %654 = vmatpush1.msra.mxu0 0.0
    %655 = vmatprep.subr.mxu0 0.0
    %656 = vmatpush1.msra.mxu0 0.0
    %657 = vmatprep.subr.mxu0 0.0
    %658 = vmatpush1.msra.mxu0 0.0
    %659 = vmatprep.subr.mxu0 0.0
    %660 = vmatpush1.msra.mxu0 0.0
    %661 = vmatprep.subr.mxu0 0.0
    %662 = vmatpush1.msra.mxu0 0.0
    %663 = vmatprep.subr.mxu0 0.0
    %664 = vmatpush1.msra.mxu0 0.0
    %665 = vmatprep.subr.mxu0 0.0
    %666 = vmatpush1.msra.mxu0 0.0
    %667 = vmatprep.subr.mxu0 0.0
    %668 = vmatpush1.msra.mxu0 0.0
    %669 = vmatprep.subr.mxu0 0.0
    %670 = vmatpush1.msra.mxu0 0.0
    %671 = vmatprep.subr.mxu0 0.0
    %672 = vmatpush1.msra.mxu0 0.0
    %673 = vmatprep.subr.mxu0 0.0
    %674 = vmatpush1.msra.mxu0 0.0
    %675 = vmatprep.subr.mxu0 0.0
    %676 = vmatpush1.msra.mxu0 0.0
    %677 = vmatprep.mubr.f32.mxu0 0.0
    %678 = vmatmul.mubr.f32.gmra.mrb[0].mxu0 %v432
    %v679 = vpop.f32.mrb[0].mxu0
    %v680 = vadd.f32 %v595, %v679
    %v681 = vpop.f32.mrb[0].mxu0
    %682 = vmatprep.mubr.f32.mxu0 0.0
    %683 = vmatmul.mubr.f32.gmra.mrb[0].mxu0 %v435
    %v684 = vpop.f32.mrb[0].mxu0
    %v685 = vadd.f32 %v600, %v684
    %v686 = vpop.f32.mrb[0].mxu0
    %687 = vmatprep.mubr.f32.mxu0 0.0
    %688 = vmatmul.mubr.f32.gmra.mrb[0].mxu0 %v438
    %v689 = vpop.f32.mrb[0].mxu0
    %v690 = vadd.f32 %v605, %v689
    %v691 = vpop.f32.mrb[0].mxu0
    %692 = vmatprep.mubr.f32.mxu0 0.0
    %693 = vmatmul.mubr.f32.gmra.mrb[0].mxu0 %v441
    %v694 = vpop.f32.mrb[0].mxu0
    %v695 = vadd.f32 %v610, %v694
    %v696 = vpop.f32.mrb[0].mxu0
    %697 = vdwg.mxu0
    %702 = vrot.lane.b32.xlu0 %v680, 64
    %v703 = vpop.permute.xlu0 %702
    %704 = vrot.lane.b32.xlu0 %v685, 64
    %v705 = vpop.permute.xlu0 %704
    %706 = vrot.lane.b32.xlu0 %v690, 64
    %v707 = vpop.permute.xlu0 %706
    %708 = vrot.lane.b32.xlu0 %v695, 64
    %v709 = vpop.permute.xlu0 %708
    %v714 = vsel %vm82, %v24, %v703
    %v715 = vsel %vm82, %v25, %v705
    %v716 = vsel %vm82, %v26, %v707
    %v717 = vsel %vm82, %v27, %v709
    %718 = vst [vmem:[#allocation2] sm:$0xff] %v714
    %719 = vst [vmem:[#allocation2 + $0x8] sm:$0xff] %v715
    %720 = vst [vmem:[#allocation2 + $0x10] sm:$0xff] %v716
    %721 = vst [vmem:[#allocation2 + $0x18] sm:$0xff] %v717
    // Predicated region
    $region26: #{tpu_custom_call.1} parent=1 // pred_check
      _
    $region27: #{tpu_custom_call.1} parent=1 // pred_check_branch
      %723 = sbr.rel (0) target = $region29
    $region28: #{tpu_custom_call.1} parent=1 // pred_region
      %s725 = ssub.s32 512, 512
      %726 = vsyncadd [#allocation3], %s725
      %s727 = sshll.u32 [#allocation2], 4
      %s728 = int_to_ptr.vmem [resolvable:$true] %s727
      %733 = dma.vmem_to_hbm [thread:$0]  %s728, 512, %s6, [#allocation3], 128, 128, 8
    $region29: #{tpu_custom_call.1} parent=1 // pred_fallthru
      _
    // Predicated region
    $region30: #{tpu_custom_call.1} parent=1 // pred_check
      _
    $region31: #{tpu_custom_call.1} parent=1 // pred_check_branch
      %735 = sbr.rel (0) target = $region33
    $region32: #{tpu_custom_call.1} parent=1 // pred_region
      %736 = dma.done [#allocation3], 512
    $region33: #{tpu_custom_call.1} parent=1 // pred_fallthru
      _
    %737 = vsyncpa [#allocation3], 1

</llo_original>
